<compile_context>
chip_gen: v5e
topology: v5e:2x2
jax: 0.10.0
libtpu: 0.0.40
codegen_flags: <defaults>
</compile_context>

<pallas_src>
import jax
import jax.numpy as jnp
from jax.experimental import pallas as pl
from jax.experimental.pallas import tpu as pltpu

# Model hyper-parameters (from the PyTorch module).
BATCH_SIZE = 1
EMBEDDING_SIZE = 1
HIDDEN_SIZE = 5
INPUT_SIZE = 5          # vocab size for the embedding
NUM_CLASSES = 5
SEQUENCE_LENGTH = 6

# Row layout of the packed parameter buffer (all widths == H == C == 5).
# Each section starts on an 8-row sublane-tile boundary:
#   rows [0, 5)    : inp_table = emb_table @ W_ih^T + b_ih + b_hh   (V, H)
#   rows [8, 13)   : W_hh^T                                         (H, H)
#   rows [16, 21)  : fc.weight^T                                    (H, C)
#   row  24        : fc.bias                                        (1, C)
_ROW_INP = 0
_ROW_WHH = 8
_ROW_FCW = 16
_ROW_FCB = 24
_PACKED_ROWS = 32


def rnn_model_kernel(idx_ref, param_ref, out_ref):
    """Whole forward pass for (B=1, T=6) in one kernel invocation.

    idx_ref   : (T,)              int32, SMEM   token indices
    param_ref : (_PACKED_ROWS,H)  f32,   VMEM   packed parameters (layout above)
    out_ref   : (T, C)            f32,   VMEM
    """
    T = SEQUENCE_LENGTH
    V = INPUT_SIZE
    H = HIDDEN_SIZE

    # Static, 8-row-aligned slices -> no sublane realignment before first use.
    w_hh = param_ref[_ROW_WHH:_ROW_WHH + H, :]          # (H, H)
    fc_w = param_ref[_ROW_FCW:_ROW_FCW + H, :]          # (H, C)
    fc_b = param_ref[_ROW_FCB:_ROW_FCB + 1, :]          # (1, C)

    hs = []

    # t = 0: h_0 = zeros, so the h @ W_hh term and the add vanish.
    tok0 = idx_ref[0]
    # Clamp defensively: PyTorch nn.Embedding would raise on OOB ids; here an
    # OOB id would otherwise read arbitrary VMEM rows (semantic divergence
    # only for invalid inputs).
    tok0 = jnp.minimum(jnp.maximum(tok0, 0), V - 1)
    h = jnp.tanh(param_ref[pl.ds(tok0, 1), :])           # (1, H)
    hs.append(h)

    # T is a small static constant; the Python loop is unrolled at trace time.
    # Per step the critical path is a single (1,H)x(H,H) dot + add + tanh; the
    # scalar token loads / row gathers are independent and overlap freely.
    for t in range(1, T):
        tok = idx_ref[t]
        tok = jnp.minimum(jnp.maximum(tok, 0), V - 1)
        inp_t = param_ref[pl.ds(tok, 1), :]               # (1, H) gathered row
        h = jnp.tanh(inp_t
                     + jnp.dot(h, w_hh, preferred_element_type=jnp.float32))
        hs.append(h)

    # Hidden stack stays in vregs; single batched FC dot + single store.
    h_stack = jnp.concatenate(hs, axis=0)                 # (T, H)
    out_ref[...] = (jnp.dot(h_stack, fc_w,
                            preferred_element_type=jnp.float32) + fc_b)


def pack_params(params):
    """Fold embedding + input projection + both biases into one (V, H) table
    and place every parameter section on an 8-row boundary of a single
    (32, 5) f32 buffer (one tiny DMA, no sublane-straddling slices)."""
    assert HIDDEN_SIZE == NUM_CLASSES, "packing assumes H == C (true for this model)"
    inp_table = (params["emb_table"] @ params["w_ih_t"]
                 + params["b_ih"] + params["b_hh"])       # (V, H)

    packed = jnp.zeros((_PACKED_ROWS, HIDDEN_SIZE), jnp.float32)
    packed = packed.at[_ROW_INP:_ROW_INP + INPUT_SIZE, :].set(
        inp_table.astype(jnp.float32))
    packed = packed.at[_ROW_WHH:_ROW_WHH + HIDDEN_SIZE, :].set(
        params["w_hh_t"].astype(jnp.float32))
    packed = packed.at[_ROW_FCW:_ROW_FCW + HIDDEN_SIZE, :].set(
        params["fc_w_t"].astype(jnp.float32))
    packed = packed.at[_ROW_FCB, :].set(
        params["fc_b"].reshape(NUM_CLASSES).astype(jnp.float32))
    assert packed.shape == (_PACKED_ROWS, HIDDEN_SIZE)
    return packed


def model_forward(x, packed_params):
    """x: (B, T) int32 token ids.  Returns (B*T, NUM_CLASSES) float32."""
    B, T = x.shape
    assert B == BATCH_SIZE and T == SEQUENCE_LENGTH
    idx = x.reshape(B * T).astype(jnp.int32)

    # Tiny kernel: ~500 flops, 30 tanh, ~1.5 KiB moved.
    cost = pl.CostEstimate(flops=500, transcendentals=30, bytes_accessed=1536)

    return pl.pallas_call(
        rnn_model_kernel,
        out_shape=jax.ShapeDtypeStruct((B * T, NUM_CLASSES), jnp.float32),
        in_specs=[pl.BlockSpec(memory_space=pltpu.MemorySpace.SMEM),   # idx
                  pl.BlockSpec(memory_space=pltpu.MemorySpace.VMEM)],  # params
        out_specs=pl.BlockSpec(memory_space=pltpu.MemorySpace.VMEM),
        cost_estimate=cost,
    )(idx, packed_params)


def init_params(key):
    """Deterministic parameter init mimicking PyTorch's default uniform init."""
    ks = jax.random.split(key, 8)
    k_rnn = 1.0 / jnp.sqrt(HIDDEN_SIZE)
    k_fc = 1.0 / jnp.sqrt(HIDDEN_SIZE)

    emb_table = jax.random.normal(ks[0], (INPUT_SIZE, EMBEDDING_SIZE),
                                  jnp.float32)  # nn.Embedding ~ N(0,1)
    w_ih = jax.random.uniform(ks[1], (HIDDEN_SIZE, EMBEDDING_SIZE),
                              jnp.float32, -k_rnn, k_rnn)
    w_hh = jax.random.uniform(ks[2], (HIDDEN_SIZE, HIDDEN_SIZE),
                              jnp.float32, -k_rnn, k_rnn)
    b_ih = jax.random.uniform(ks[3], (HIDDEN_SIZE,), jnp.float32, -k_rnn, k_rnn)
    b_hh = jax.random.uniform(ks[4], (HIDDEN_SIZE,), jnp.float32, -k_rnn, k_rnn)
    fc_w = jax.random.uniform(ks[5], (NUM_CLASSES, HIDDEN_SIZE),
                              jnp.float32, -k_fc, k_fc)
    fc_b = jax.random.uniform(ks[6], (NUM_CLASSES,), jnp.float32, -k_fc, k_fc)

    return {
        "emb_table": emb_table,
        "w_ih_t": w_ih.T,                      # (E, H)
        "w_hh_t": w_hh.T,                      # (H, H)
        "b_ih": b_ih.reshape(1, HIDDEN_SIZE),  # (1, H)
        "b_hh": b_hh.reshape(1, HIDDEN_SIZE),  # (1, H)
        "fc_w_t": fc_w.T,                      # (H, C)
        "fc_b": fc_b.reshape(1, NUM_CLASSES),  # (1, C)
    }


def reference_forward(x, params):
    """Pure-JAX reference matching the PyTorch forward exactly."""
    emb = params["emb_table"][x]                                   # (B, T, E)
    emb = emb.reshape(BATCH_SIZE, SEQUENCE_LENGTH, -1)
    h = jnp.zeros((BATCH_SIZE, HIDDEN_SIZE), jnp.float32)
    outs = []
    for t in range(SEQUENCE_LENGTH):
        h = jnp.tanh(emb[:, t, :] @ params["w_ih_t"] + params["b_ih"]
                     + h @ params["w_hh_t"] + params["b_hh"])
        outs.append(h)
    out = jnp.stack(outs, axis=1)                                  # (B, T, H)
    out = out.reshape(-1, NUM_CLASSES)   # relies on H == C, as in the PyTorch model
    return out @ params["fc_w_t"] + params["fc_b"]


if __name__ == "__main__":
    key = jax.random.PRNGKey(0)
    k_x, k_p = jax.random.split(key)

    x = jax.random.randint(k_x, (BATCH_SIZE, SEQUENCE_LENGTH), 0, INPUT_SIZE,
                           dtype=jnp.int32)
    params = init_params(k_p)
    packed = pack_params(params)   # one-time host-side parameter packing

    out = model_forward(x, packed)
    out = jax.block_until_ready(out)

    ref = reference_forward(x, params)
    assert out.shape == (BATCH_SIZE * SEQUENCE_LENGTH, NUM_CLASSES)
    assert jnp.allclose(out, ref, atol=1e-5, rtol=1e-5)

    print("KERNEL_OK")
</pallas_src>

<mosaic_0001>
module attributes {stable_mosaic.version = 11 : i64} {
  func.func @rnn_model_kernel(%arg0: memref<6xi32, #tpu.memory_space<smem>>, %arg1: memref<32x5xf32, #tpu.memory_space<vmem>>, %arg2: memref<6x5xf32, #tpu.memory_space<vmem>>) attributes {dimension_semantics = [], scalar_prefetch = 0 : i64, scratch_operands = 0 : i64, tpu.core_type = #tpu.core_type<tc>} {
    %c8 = arith.constant 8 : index
    %c0 = arith.constant 0 : index
    %0 = vector.load %arg1[%c8, %c0] : memref<32x5xf32, #tpu.memory_space<vmem>>, vector<5x5xf32>
    %c16 = arith.constant 16 : index
    %c0_0 = arith.constant 0 : index
    %1 = vector.load %arg1[%c16, %c0_0] : memref<32x5xf32, #tpu.memory_space<vmem>>, vector<5x5xf32>
    %c24 = arith.constant 24 : index
    %c0_1 = arith.constant 0 : index
    %2 = vector.load %arg1[%c24, %c0_1] : memref<32x5xf32, #tpu.memory_space<vmem>>, vector<1x5xf32>
    %c0_2 = arith.constant 0 : index
    %3 = memref.load %arg0[%c0_2] : memref<6xi32, #tpu.memory_space<smem>>
    %c0_i32 = arith.constant 0 : i32
    %4 = arith.maxsi %3, %c0_i32 : i32
    %c4_i32 = arith.constant 4 : i32
    %5 = arith.minsi %4, %c4_i32 : i32
    %6 = arith.index_cast %5 : i32 to index
    %c0_3 = arith.constant 0 : index
    %7 = vector.load %arg1[%6, %c0_3] : memref<32x5xf32, #tpu.memory_space<vmem>>, vector<1x5xf32>
    %8 = math.tanh %7 : vector<1x5xf32>
    %c1 = arith.constant 1 : index
    %9 = memref.load %arg0[%c1] : memref<6xi32, #tpu.memory_space<smem>>
    %c0_i32_4 = arith.constant 0 : i32
    %10 = arith.maxsi %9, %c0_i32_4 : i32
    %c4_i32_5 = arith.constant 4 : i32
    %11 = arith.minsi %10, %c4_i32_5 : i32
    %12 = arith.index_cast %11 : i32 to index
    %c0_6 = arith.constant 0 : index
    %13 = vector.load %arg1[%12, %c0_6] : memref<32x5xf32, #tpu.memory_space<vmem>>, vector<1x5xf32>
    %cst = arith.constant dense<0.000000e+00> : vector<1x5xf32>
    %14 = tpu.matmul %8, %0, %cst {dimension_numbers = #tpu.dot_dimension_numbers<[1], [0], [0], [1], [0, 0, 1, 1], [], []>} : vector<1x5xf32>, vector<5x5xf32>, vector<1x5xf32> -> vector<1x5xf32>
    %15 = arith.addf %13, %14 : vector<1x5xf32>
    %16 = math.tanh %15 : vector<1x5xf32>
    %c2 = arith.constant 2 : index
    %17 = memref.load %arg0[%c2] : memref<6xi32, #tpu.memory_space<smem>>
    %c0_i32_7 = arith.constant 0 : i32
    %18 = arith.maxsi %17, %c0_i32_7 : i32
    %c4_i32_8 = arith.constant 4 : i32
    %19 = arith.minsi %18, %c4_i32_8 : i32
    %20 = arith.index_cast %19 : i32 to index
    %c0_9 = arith.constant 0 : index
    %21 = vector.load %arg1[%20, %c0_9] : memref<32x5xf32, #tpu.memory_space<vmem>>, vector<1x5xf32>
    %cst_10 = arith.constant dense<0.000000e+00> : vector<1x5xf32>
    %22 = tpu.matmul %16, %0, %cst_10 {dimension_numbers = #tpu.dot_dimension_numbers<[1], [0], [0], [1], [0, 0, 1, 1], [], []>} : vector<1x5xf32>, vector<5x5xf32>, vector<1x5xf32> -> vector<1x5xf32>
    %23 = arith.addf %21, %22 : vector<1x5xf32>
    %24 = math.tanh %23 : vector<1x5xf32>
    %c3 = arith.constant 3 : index
    %25 = memref.load %arg0[%c3] : memref<6xi32, #tpu.memory_space<smem>>
    %c0_i32_11 = arith.constant 0 : i32
    %26 = arith.maxsi %25, %c0_i32_11 : i32
    %c4_i32_12 = arith.constant 4 : i32
    %27 = arith.minsi %26, %c4_i32_12 : i32
    %28 = arith.index_cast %27 : i32 to index
    %c0_13 = arith.constant 0 : index
    %29 = vector.load %arg1[%28, %c0_13] : memref<32x5xf32, #tpu.memory_space<vmem>>, vector<1x5xf32>
    %cst_14 = arith.constant dense<0.000000e+00> : vector<1x5xf32>
    %30 = tpu.matmul %24, %0, %cst_14 {dimension_numbers = #tpu.dot_dimension_numbers<[1], [0], [0], [1], [0, 0, 1, 1], [], []>} : vector<1x5xf32>, vector<5x5xf32>, vector<1x5xf32> -> vector<1x5xf32>
    %31 = arith.addf %29, %30 : vector<1x5xf32>
    %32 = math.tanh %31 : vector<1x5xf32>
    %c4 = arith.constant 4 : index
    %33 = memref.load %arg0[%c4] : memref<6xi32, #tpu.memory_space<smem>>
    %c0_i32_15 = arith.constant 0 : i32
    %34 = arith.maxsi %33, %c0_i32_15 : i32
    %c4_i32_16 = arith.constant 4 : i32
    %35 = arith.minsi %34, %c4_i32_16 : i32
    %36 = arith.index_cast %35 : i32 to index
    %c0_17 = arith.constant 0 : index
    %37 = vector.load %arg1[%36, %c0_17] : memref<32x5xf32, #tpu.memory_space<vmem>>, vector<1x5xf32>
    %cst_18 = arith.constant dense<0.000000e+00> : vector<1x5xf32>
    %38 = tpu.matmul %32, %0, %cst_18 {dimension_numbers = #tpu.dot_dimension_numbers<[1], [0], [0], [1], [0, 0, 1, 1], [], []>} : vector<1x5xf32>, vector<5x5xf32>, vector<1x5xf32> -> vector<1x5xf32>
    %39 = arith.addf %37, %38 : vector<1x5xf32>
    %40 = math.tanh %39 : vector<1x5xf32>
    %c5 = arith.constant 5 : index
    %41 = memref.load %arg0[%c5] : memref<6xi32, #tpu.memory_space<smem>>
    %c0_i32_19 = arith.constant 0 : i32
    %42 = arith.maxsi %41, %c0_i32_19 : i32
    %c4_i32_20 = arith.constant 4 : i32
    %43 = arith.minsi %42, %c4_i32_20 : i32
    %44 = arith.index_cast %43 : i32 to index
    %c0_21 = arith.constant 0 : index
    %45 = vector.load %arg1[%44, %c0_21] : memref<32x5xf32, #tpu.memory_space<vmem>>, vector<1x5xf32>
    %cst_22 = arith.constant dense<0.000000e+00> : vector<1x5xf32>
    %46 = tpu.matmul %40, %0, %cst_22 {dimension_numbers = #tpu.dot_dimension_numbers<[1], [0], [0], [1], [0, 0, 1, 1], [], []>} : vector<1x5xf32>, vector<5x5xf32>, vector<1x5xf32> -> vector<1x5xf32>
    %47 = arith.addf %45, %46 : vector<1x5xf32>
    %48 = math.tanh %47 : vector<1x5xf32>
    %49 = tpu.concatenate %8, %16, %24, %32, %40, %48 in 0 : vector<1x5xf32>, vector<1x5xf32>, vector<1x5xf32>, vector<1x5xf32>, vector<1x5xf32>, vector<1x5xf32> -> vector<6x5xf32>
    %cst_23 = arith.constant dense<0.000000e+00> : vector<6x5xf32>
    %50 = tpu.matmul %49, %1, %cst_23 {dimension_numbers = #tpu.dot_dimension_numbers<[1], [0], [0], [1], [0, 0, 1, 1], [], []>} : vector<6x5xf32>, vector<5x5xf32>, vector<6x5xf32> -> vector<6x5xf32>
    %51 = vector.broadcast %2 : vector<1x5xf32> to vector<6x5xf32>
    %52 = arith.addf %50, %51 : vector<6x5xf32>
    %c0_24 = arith.constant 0 : index
    %c0_25 = arith.constant 0 : index
    %53 = vector.load %arg2[%c0_24, %c0_25] : memref<6x5xf32, #tpu.memory_space<vmem>>, vector<6x5xf32>
    tpu.vector_store %arg2[%c0_24, %c0_25], %52 {strides = array<i32>} : memref<6x5xf32, #tpu.memory_space<vmem>>, vector<6x5xf32>,
    return
  }
}

</mosaic_0001>

<llo_original>
// kernel: tpu_custom_call.1
$region0: #{tpu_custom_call.1}
  #allocation0 [shape = 'u32[]', space=smem, size = 0x4, offset = 0x4, fixed_abs, tag = 'smem constant byte address 0x4 - core index']
  #allocation1 [shape = 'u32[72,128]{1,0:T(1,128)}', space=vmem, size = 0x9000, scoped, tag = 'internal scratch']
  %s0 = inlined_call_operand.vmem [shape: s32[6], index: 0, kind: input, shape index: {}]
  %s1 = inlined_call_operand.vmem [shape: f32[32,5], index: 1, kind: input, shape index: {}]
  %s2 = inlined_call_operand.hbm [shape: f32[6,5], index: 2, kind: output, shape index: {}]
  %s3 = sld [smem:[#allocation0]]
  $region22: #{tpu_custom_call.1} parent=0
    _
  %s5 = ssub.s32 1, %s3
  %s6 = scalar_select 0, %s5, %s3
  $region1: #{tpu_custom_call.1} parent=0
    #allocation2 [shape = 'u8[512]{0}', space=smem, size = 0x200, scoped, tag = 'input window, operand 0, single buffered']
    #allocation3 [shape = 's32[1]{0}', space=sflag, size = 0x4, scoped, tag = 'scoped memory for tpu_custom_call.1']
    #allocation4 [shape = 's32[1]{0}', space=sflag, size = 0x4, scoped, tag = 'scoped memory for tpu_custom_call.1']
    #allocation5 [shape = 'u8[4096]{0}', space=vmem, size = 0x1000, scoped, tag = 'output window, operand 0, single buffered']
    %7 = vsyncpa [#allocation4], 0
    %8 = vsyncpa [#allocation3], 0
    // Predicated region
    $region2: #{tpu_custom_call.1} parent=1 // pred_check
      _
    $region3: #{tpu_custom_call.1} parent=1 // pred_check_branch
      %10 = sbr.rel (0) target = $region5
    $region4: #{tpu_custom_call.1} parent=1 // pred_region
      %12 = vsyncadd [#allocation4], 0
      %s14 = sshll.u32 %s0, 4
      %s15 = int_to_ptr.vmem [resolvable:$true] %s14
      %17 = dma.vmem_to_smem %s15, 16, [#allocation2], [#allocation4]
    $region5: #{tpu_custom_call.1} parent=1 // pred_fallthru
      _
    // Predicated region
    $region6: #{tpu_custom_call.1} parent=1 // pred_check
      _
    $region7: #{tpu_custom_call.1} parent=1 // pred_check_branch
      %19 = sbr.rel (0) target = $region9
    $region8: #{tpu_custom_call.1} parent=1 // pred_region
      _
    $region9: #{tpu_custom_call.1} parent=1 // pred_fallthru
      _
    // Predicated region
    $region10: #{tpu_custom_call.1} parent=1 // pred_check
      _
    $region11: #{tpu_custom_call.1} parent=1 // pred_check_branch
      %21 = sbr.rel (0) target = $region13
    $region12: #{tpu_custom_call.1} parent=1 // pred_region
      %23 = dma.done [#allocation4], 16
    $region13: #{tpu_custom_call.1} parent=1 // pred_fallthru
      _
    %24 = sfence
    %v25 = vld [vmem:[%s1 + $0x8] sm:$0x1f]
    %v26 = vld [vmem:[%s1 + $0x10] sm:$0x1f]
    %v27 = vld [vmem:[%s1 + $0x18] sm:$0x1]
    %s28 = sld [smem:[#allocation2]]
    %p29 = scmp.gt.s32.totalorder %s28, 0
    %s30 = scalar_select %p29, %s28, 0
    %p31 = scmp.lt.s32.totalorder %s30, 4
    %s32 = scalar_select %p31, %s30, 4
    %s33 = scalar_lea.vmem %s1, %s32
    %v34 = vld [vmem:[%s33] sm:$0x1]
    %v35 = vtanh.pop %v34
    %s36 = sld [smem:[#allocation2 + $0x1]]
    %p37 = scmp.gt.s32.totalorder %s36, 0
    %s38 = scalar_select %p37, %s36, 0
    %p39 = scmp.lt.s32.totalorder %s38, 4
    %s40 = scalar_select %p39, %s38, 4
    %s41 = scalar_lea.vmem %s1, %s40
    %v42 = vld [vmem:[%s41] sm:$0x1]
    %vm43 = vcmask 39936
    %v45 = vsel %vm43, %v35, 0
    %vm47 = vcmask 1044480
    %v49 = vsel %vm47, %v25, 0
    %51 = vmatpush.msra.mxu0 0.0
    %52 = vmatpush.msra.mxu0 0.0
    %53 = vmatpush.msra.mxu0 0.0
    %54 = vmatpush.msra.mxu0 0.0
    %55 = vmatpush.msra.mxu0 0.0
    %56 = vmatpush.msra.mxu0 0.0
    %57 = vmatpush.msra.mxu0 0.0
    %58 = vmatpush.msra.mxu0 0.0
    %59 = vmatpush.msra.mxu0 0.0
    %60 = vmatpush.msra.mxu0 0.0
    %61 = vmatpush.msra.mxu0 0.0
    %62 = vmatpush.msra.mxu0 0.0
    %63 = vmatpush.msra.mxu0 0.0
    %64 = vmatpush.msra.mxu0 0.0
    %65 = vmatpush.msra.mxu0 0.0
    %66 = vmatpush.msra.mxu0 %v49
    %67 = vmatmul.f32.gmra.mxu0 %v45
    %v68 = vpop.f32.mrf.mxu0
    %v69 = vadd.f32 0.0, %v68
    %70 = vdwg.mxu0
    %v71 = vadd.f32 %v42, %v69
    %v72 = vtanh.pop %v71
    %s73 = sld [smem:[#allocation2 + $0x2]]
    %p74 = scmp.gt.s32.totalorder %s73, 0
    %s75 = scalar_select %p74, %s73, 0
    %p76 = scmp.lt.s32.totalorder %s75, 4
    %s77 = scalar_select %p76, %s75, 4
    %s78 = scalar_lea.vmem %s1, %s77
    %v79 = vld [vmem:[%s78] sm:$0x1]
    %v81 = vsel %vm43, %v72, 0
    %83 = vmatpush.msra.mxu0 0.0
    %84 = vmatpush.msra.mxu0 0.0
    %85 = vmatpush.msra.mxu0 0.0
    %86 = vmatpush.msra.mxu0 0.0
    %87 = vmatpush.msra.mxu0 0.0
    %88 = vmatpush.msra.mxu0 0.0
    %89 = vmatpush.msra.mxu0 0.0
    %90 = vmatpush.msra.mxu0 0.0
    %91 = vmatpush.msra.mxu0 0.0
    %92 = vmatpush.msra.mxu0 0.0
    %93 = vmatpush.msra.mxu0 0.0
    %94 = vmatpush.msra.mxu0 0.0
    %95 = vmatpush.msra.mxu0 0.0
    %96 = vmatpush.msra.mxu0 0.0
    %97 = vmatpush.msra.mxu0 0.0
    %98 = vmatpush.msra.mxu0 %v49
    %99 = vmatmul.f32.gmra.mxu0 %v81
    %v100 = vpop.f32.mrf.mxu0
    %v101 = vadd.f32 0.0, %v100
    %102 = vdwg.mxu0
    %v103 = vadd.f32 %v79, %v101
    %v104 = vtanh.pop %v103
    %s105 = sld [smem:[#allocation2 + $0x3]]
    %p106 = scmp.gt.s32.totalorder %s105, 0
    %s107 = scalar_select %p106, %s105, 0
    %p108 = scmp.lt.s32.totalorder %s107, 4
    %s109 = scalar_select %p108, %s107, 4
    %s110 = scalar_lea.vmem %s1, %s109
    %v111 = vld [vmem:[%s110] sm:$0x1]
    %v113 = vsel %vm43, %v104, 0
    %115 = vmatpush.msra.mxu0 0.0
    %116 = vmatpush.msra.mxu0 0.0
    %117 = vmatpush.msra.mxu0 0.0
    %118 = vmatpush.msra.mxu0 0.0
    %119 = vmatpush.msra.mxu0 0.0
    %120 = vmatpush.msra.mxu0 0.0
    %121 = vmatpush.msra.mxu0 0.0
    %122 = vmatpush.msra.mxu0 0.0
    %123 = vmatpush.msra.mxu0 0.0
    %124 = vmatpush.msra.mxu0 0.0
    %125 = vmatpush.msra.mxu0 0.0
    %126 = vmatpush.msra.mxu0 0.0
    %127 = vmatpush.msra.mxu0 0.0
    %128 = vmatpush.msra.mxu0 0.0
    %129 = vmatpush.msra.mxu0 0.0
    %130 = vmatpush.msra.mxu0 %v49
    %131 = vmatmul.f32.gmra.mxu0 %v113
    %v132 = vpop.f32.mrf.mxu0
    %v133 = vadd.f32 0.0, %v132
    %134 = vdwg.mxu0
    %v135 = vadd.f32 %v111, %v133
    %v136 = vtanh.pop %v135
    %s137 = sld [smem:[#allocation2 + $0x4]]
    %p138 = scmp.gt.s32.totalorder %s137, 0
    %s139 = scalar_select %p138, %s137, 0
    %p140 = scmp.lt.s32.totalorder %s139, 4
    %s141 = scalar_select %p140, %s139, 4
    %s142 = scalar_lea.vmem %s1, %s141
    %v143 = vld [vmem:[%s142] sm:$0x1]
    %v145 = vsel %vm43, %v136, 0
    %147 = vmatpush.msra.mxu0 0.0
    %148 = vmatpush.msra.mxu0 0.0
    %149 = vmatpush.msra.mxu0 0.0
    %150 = vmatpush.msra.mxu0 0.0
    %151 = vmatpush.msra.mxu0 0.0
    %152 = vmatpush.msra.mxu0 0.0
    %153 = vmatpush.msra.mxu0 0.0
    %154 = vmatpush.msra.mxu0 0.0
    %155 = vmatpush.msra.mxu0 0.0
    %156 = vmatpush.msra.mxu0 0.0
    %157 = vmatpush.msra.mxu0 0.0
    %158 = vmatpush.msra.mxu0 0.0
    %159 = vmatpush.msra.mxu0 0.0
    %160 = vmatpush.msra.mxu0 0.0
    %161 = vmatpush.msra.mxu0 0.0
    %162 = vmatpush.msra.mxu0 %v49
    %163 = vmatmul.f32.gmra.mxu0 %v145
    %v164 = vpop.f32.mrf.mxu0
    %v165 = vadd.f32 0.0, %v164
    %166 = vdwg.mxu0
    %v167 = vadd.f32 %v143, %v165
    %v168 = vtanh.pop %v167
    %s169 = sld [smem:[#allocation2 + $0x5]]
    %p170 = scmp.gt.s32.totalorder %s169, 0
    %s171 = scalar_select %p170, %s169, 0
    %p172 = scmp.lt.s32.totalorder %s171, 4
    %s173 = scalar_select %p172, %s171, 4
    %s174 = scalar_lea.vmem %s1, %s173
    %v175 = vld [vmem:[%s174] sm:$0x1]
    %v177 = vsel %vm43, %v168, 0
    %179 = vmatpush.msra.mxu0 0.0
    %180 = vmatpush.msra.mxu0 0.0
    %181 = vmatpush.msra.mxu0 0.0
    %182 = vmatpush.msra.mxu0 0.0
    %183 = vmatpush.msra.mxu0 0.0
    %184 = vmatpush.msra.mxu0 0.0
    %185 = vmatpush.msra.mxu0 0.0
    %186 = vmatpush.msra.mxu0 0.0
    %187 = vmatpush.msra.mxu0 0.0
    %188 = vmatpush.msra.mxu0 0.0
    %189 = vmatpush.msra.mxu0 0.0
    %190 = vmatpush.msra.mxu0 0.0
    %191 = vmatpush.msra.mxu0 0.0
    %192 = vmatpush.msra.mxu0 0.0
    %193 = vmatpush.msra.mxu0 0.0
    %194 = vmatpush.msra.mxu0 %v49
    %195 = vmatmul.f32.gmra.mxu0 %v177
    %v196 = vpop.f32.mrf.mxu0
    %v197 = vadd.f32 0.0, %v196
    %198 = vdwg.mxu0
    %v199 = vadd.f32 %v175, %v197
    %v200 = vtanh.pop %v199
    %v201 = vrot.slane %v72, 7
    %v203 = vrot.slane %v104, 6
    %v205 = vrot.slane %v136, 5
    %v207 = vrot.slane %v168, 4
    %v210 = vrot.slane %v200, 3
    %vm212 = vcmask 1040384
    %v213 = vsel %vm212, %v35, %v201
    %vm214 = vcmask 1041408
    %v215 = vsel %vm214, %v213, %v203
    %vm216 = vcmask 1042432
    %v217 = vsel %vm216, %v215, %v205
    %vm218 = vcmask 1043456
    %v219 = vsel %vm218, %v217, %v207
    %v220 = vsel %vm47, %v219, %v210
    %v221 = vperm.slane %v27, 0
    %v223 = vsel %vm43, %v220, 0
    %v226 = vsel %vm47, %v26, 0
    %228 = vmatpush.msra.mxu0 0.0
    %229 = vmatpush.msra.mxu0 0.0
    %230 = vmatpush.msra.mxu0 0.0
    %231 = vmatpush.msra.mxu0 0.0
    %232 = vmatpush.msra.mxu0 0.0
    %233 = vmatpush.msra.mxu0 0.0
    %234 = vmatpush.msra.mxu0 0.0
    %235 = vmatpush.msra.mxu0 0.0
    %236 = vmatpush.msra.mxu0 0.0
    %237 = vmatpush.msra.mxu0 0.0
    %238 = vmatpush.msra.mxu0 0.0
    %239 = vmatpush.msra.mxu0 0.0
    %240 = vmatpush.msra.mxu0 0.0
    %241 = vmatpush.msra.mxu0 0.0
    %242 = vmatpush.msra.mxu0 0.0
    %243 = vmatpush.msra.mxu0 %v226
    %244 = vmatmul.f32.gmra.mxu0 %v223
    %v245 = vpop.f32.mrf.mxu0
    %v246 = vadd.f32 %v221, %v245
    %247 = vdwg.mxu0
    %vm248 = vcmask 37888
    %249 = vst.msk [vmem:[#allocation5] sm:$0x3f] %vm248, %v246
    // Predicated region
    $region14: #{tpu_custom_call.1} parent=1 // pred_check
      _
    $region15: #{tpu_custom_call.1} parent=1 // pred_check_branch
      %251 = sbr.rel (0) target = $region17
    $region16: #{tpu_custom_call.1} parent=1 // pred_region
      %253 = vsyncadd [#allocation3], 0
      %s255 = sshll.u32 [#allocation5], 4
      %s256 = int_to_ptr.vmem [resolvable:$true] %s255
      %s257 = sshll.u32 %s2, 4
      %s258 = int_to_ptr.hbm [resolvable:$true] %s257
      %260 = dma.vmem_to_hbm [thread:$0]  %s256, 128, %s258, [#allocation3]
    $region17: #{tpu_custom_call.1} parent=1 // pred_fallthru
      _
    // Predicated region
    $region18: #{tpu_custom_call.1} parent=1 // pred_check
      _
    $region19: #{tpu_custom_call.1} parent=1 // pred_check_branch
      %262 = sbr.rel (0) target = $region21
    $region20: #{tpu_custom_call.1} parent=1 // pred_region
      %264 = dma.done [#allocation3], 128
    $region21: #{tpu_custom_call.1} parent=1 // pred_fallthru
      _
    %265 = vsyncpa [#allocation3], 1
    %266 = vsyncpa [#allocation4], 1

</llo_original>
